<compile_context>
chip_gen: v7x
topology: tpu7x:2x2x1
jax: 0.10.0
libtpu: 0.0.40
codegen_flags: <defaults>
</compile_context>

<pallas_src>
import functools

import jax
import jax.numpy as jnp
from jax.experimental import pallas as pl
from jax.experimental.pallas import tpu as pltpu


def _doc2vec_attention_kernel(x_ref, y_ref, wt_ref, b_ref,
                              xatt_ref, yatt_ref, att_ref, *, ly_actual):
    xv = x_ref[...]          # (TB, Lx, D)   native dtype
    yv = y_ref[...]          # (TB, Lyp, D)  native dtype (zero-padded keys)
    wt = wt_ref[...]         # (D, D)        pre-transposed: in x out
    bias = b_ref[...]        # (1, D)

    tb, lx, d = xv.shape
    lyp = yv.shape[1]

    # ---- Linear on x: fold all TB*Lx rows into one MXU matmul (f32 acc). ----
    x2d = xv.reshape(tb * lx, d)
    _x = jax.lax.dot_general(x2d, wt, (((1,), (0,)), ((), ())),
                             preferred_element_type=jnp.float32)
    _x = _x + bias.astype(jnp.float32)
    _x = _x.astype(xv.dtype).reshape(tb, lx, d)          # back to input dtype

    # ---- att[b,l,k] = sum_d _x[b,l,d] * y[b,k,d]  (no transpose materialized)
    att = jax.lax.dot_general(_x, yv, (((2,), (2,)), ((0,), (0,))),
                              preferred_element_type=jnp.float32)  # (TB,Lx,Lyp) f32
    att_ref[...] = att.astype(att_ref.dtype)

    # Mask padded key columns with a large negative so exp() underflows to 0
    # exactly (keeps the dim=2 softmax correct; padded dim=1 columns only feed
    # yatt rows that are sliced away on the host).
    if lyp != ly_actual:
        col = jax.lax.broadcasted_iota(jnp.int32, (tb, lx, lyp), 2)
        att_sm = jnp.where(col < ly_actual, att, jnp.float32(-1e30))
    else:
        att_sm = att

    # ---- softmax over dim=2 (keys) -> x_attention. Normalize AFTER the AV
    # matmul: (TB,Lx,1) reciprocal broadcast over (TB,Lx,D). ----
    m2 = jnp.max(att_sm, axis=2, keepdims=True)
    e2 = jnp.exp(att_sm - m2)
    denom2 = jnp.sum(e2, axis=2, keepdims=True)          # (TB, Lx, 1)
    xatt = jax.lax.dot_general(e2.astype(yv.dtype), yv,
                               (((2,), (1,)), ((0,), (0,))),
                               preferred_element_type=jnp.float32)  # (TB,Lx,D)
    xatt = xatt * pl.reciprocal(denom2, approx=True)
    xatt_ref[...] = xatt.astype(xatt_ref.dtype)

    # ---- softmax over dim=1 (queries) -> y_attention. Normalize with a
    # (TB,1,Lyp) reciprocal broadcast (no lane->sublane transpose needed). ----
    m1 = jnp.max(att_sm, axis=1, keepdims=True)
    e1 = jnp.exp(att_sm - m1)
    recip1 = pl.reciprocal(jnp.sum(e1, axis=1, keepdims=True), approx=True)
    sm1 = (e1 * recip1).astype(xv.dtype)
    yatt = jax.lax.dot_general(sm1, xv, (((1,), (1,)), ((0,), (0,))),
                               preferred_element_type=jnp.float32)  # (TB,Lyp,D)
    yatt_ref[...] = yatt.astype(yatt_ref.dtype)


def _pick_tb(batch, lx, target_rows=512):
    """Batches folded per grid step: grow TB*Lx toward ~target_rows MXU rows,
    but keep >= 2 grid steps when possible (feeds both v7x TensorCores)."""
    divisors = [d for d in range(1, batch + 1) if batch % d == 0]
    fitting = [d for d in divisors if d * lx <= target_rows] or [1]
    tb = max(fitting)
    if batch // tb < 2:
        two_step = [d for d in fitting if batch // d >= 2]
        if two_step:
            tb = max(two_step)
    return tb


def doc2vec_attention(x, y, weight, bias, *, target_rows=512):
    """x: (B, Lx, D); y: (B, Ly, D); weight: (D_out, D_in) PyTorch-style; bias: (D,)."""
    B, Lx, D = x.shape
    _, Ly, _ = y.shape

    # Lane-dense key axis / att writeback: pad Ly up to a multiple of 128.
    Lyp = ((Ly + 127) // 128) * 128
    y_in = jnp.pad(y, ((0, 0), (0, Lyp - Ly), (0, 0))) if Lyp != Ly else y

    wt = weight.T                  # (D_in, D_out) so the kernel does x @ wt + b
    b2 = bias.reshape(1, D)

    TB = _pick_tb(B, Lx, target_rows)
    grid = (B // TB,)

    kernel = functools.partial(_doc2vec_attention_kernel, ly_actual=Ly)

    xatt, yatt_p, att_p = pl.pallas_call(
        kernel,
        out_shape=(
            jax.ShapeDtypeStruct((B, Lx, D), x.dtype),    # x_attention
            jax.ShapeDtypeStruct((B, Lyp, D), x.dtype),   # y_attention (padded)
            jax.ShapeDtypeStruct((B, Lx, Lyp), x.dtype),  # attention  (padded)
        ),
        grid_spec=pltpu.PrefetchScalarGridSpec(
            num_scalar_prefetch=0,
            grid=grid,
            in_specs=[
                pl.BlockSpec((TB, Lx, D), lambda b: (b, 0, 0)),
                pl.BlockSpec((TB, Lyp, D), lambda b: (b, 0, 0)),
                pl.BlockSpec((D, D), lambda b: (0, 0)),
                pl.BlockSpec((1, D), lambda b: (0, 0)),
            ],
            out_specs=[
                pl.BlockSpec((TB, Lx, D), lambda b: (b, 0, 0)),
                pl.BlockSpec((TB, Lyp, D), lambda b: (b, 0, 0)),
                pl.BlockSpec((TB, Lx, Lyp), lambda b: (b, 0, 0)),
            ],
        ),
        compiler_params=pltpu.CompilerParams(
            dimension_semantics=("parallel",),
            vmem_limit_bytes=32 * 1024 * 1024,
        ),
    )(x, y_in, wt, b2)

    # Drop the padded key rows/columns on the host.
    return xatt, yatt_p[:, :Ly, :], att_p[:, :, :Ly]


def _reference(x, y, weight, bias):
    _x = jnp.einsum("bld,od->blo", x, weight) + bias
    att = jnp.einsum("bld,bkd->blk", _x, y)
    xatt = jnp.einsum("blk,bkd->bld", jax.nn.softmax(att, axis=2), y)
    yatt = jnp.einsum("blk,bld->bkd", jax.nn.softmax(att, axis=1), x)
    return xatt, yatt, att


if __name__ == "__main__":
    B, Lx, Ly, D = 2, 16, 8, 128   # small d_hidden (module default is 512)

    key = jax.random.PRNGKey(0)
    kx, ky, kw, kb = jax.random.split(key, 4)
    x = jax.random.normal(kx, (B, Lx, D), dtype=jnp.float32)
    y = jax.random.normal(ky, (B, Ly, D), dtype=jnp.float32)
    # Deterministic Linear(d_hidden, d_hidden) params (PyTorch-style shapes).
    bound = 1.0 / (D ** 0.5)
    weight = jax.random.uniform(kw, (D, D), minval=-bound, maxval=bound,
                                dtype=jnp.float32)
    bias = jax.random.uniform(kb, (D,), minval=-bound, maxval=bound,
                              dtype=jnp.float32)

    xatt, yatt, att = doc2vec_attention(x, y, weight, bias)
    jax.block_until_ready((xatt, yatt, att))

    r_xatt, r_yatt, r_att = _reference(x, y, weight, bias)
    # att path is unchanged numerically; xatt/yatt use the EUP approximate
    # reciprocal (post-matmul normalization), so give them a looser tolerance.
    assert jnp.allclose(att, r_att, atol=1e-3, rtol=1e-4)
    assert jnp.allclose(xatt, r_xatt, atol=1e-2, rtol=1e-2)
    assert jnp.allclose(yatt, r_yatt, atol=1e-2, rtol=1e-2)

    print("KERNEL_OK")
</pallas_src>

<mosaic_0001>
module attributes {stable_mosaic.version = 11 : i64} {
  func.func @_doc2vec_attention_kernel(%arg0: i32, %arg1: memref<1x16x128xf32, #tpu.memory_space<vmem>>, %arg2: memref<1x128x128xf32, #tpu.memory_space<vmem>>, %arg3: memref<128x128xf32, #tpu.memory_space<vmem>>, %arg4: memref<1x128xf32, #tpu.memory_space<vmem>>, %arg5: memref<1x16x128xf32, #tpu.memory_space<vmem>>, %arg6: memref<1x128x128xf32, #tpu.memory_space<vmem>>, %arg7: memref<1x16x128xf32, #tpu.memory_space<vmem>>) attributes {dimension_semantics = [#tpu.dimension_semantics<parallel>], iteration_bounds = array<i64: 2>, scalar_prefetch = 0 : i64, scratch_operands = 0 : i64, tpu.core_type = #tpu.core_type<tc>, window_params = [{transform_indices = @transform_0, window_bounds = array<i64: 1, 16, 128>}, {transform_indices = @transform_1, window_bounds = array<i64: 1, 128, 128>}, {pipeline_mode = #tpu.pipeline_mode<synchronous>, transform_indices = @transform_2, window_bounds = array<i64: 128, 128>}, {pipeline_mode = #tpu.pipeline_mode<synchronous>, transform_indices = @transform_3, window_bounds = array<i64: 1, 128>}, {transform_indices = @transform_4, window_bounds = array<i64: 1, 16, 128>}, {transform_indices = @transform_5, window_bounds = array<i64: 1, 128, 128>}, {transform_indices = @transform_6, window_bounds = array<i64: 1, 16, 128>}]} {
    %c0 = arith.constant 0 : index
    %c0_0 = arith.constant 0 : index
    %c0_1 = arith.constant 0 : index
    %0 = vector.load %arg1[%c0, %c0_0, %c0_1] : memref<1x16x128xf32, #tpu.memory_space<vmem>>, vector<1x16x128xf32>
    %c0_2 = arith.constant 0 : index
    %c0_3 = arith.constant 0 : index
    %c0_4 = arith.constant 0 : index
    %1 = vector.load %arg2[%c0_2, %c0_3, %c0_4] : memref<1x128x128xf32, #tpu.memory_space<vmem>>, vector<1x128x128xf32>
    %c0_5 = arith.constant 0 : index
    %c0_6 = arith.constant 0 : index
    %2 = vector.load %arg3[%c0_5, %c0_6] : memref<128x128xf32, #tpu.memory_space<vmem>>, vector<128x128xf32>
    %c0_7 = arith.constant 0 : index
    %c0_8 = arith.constant 0 : index
    %3 = vector.load %arg4[%c0_7, %c0_8] : memref<1x128xf32, #tpu.memory_space<vmem>>, vector<1x128xf32>
    %4 = vector.shape_cast %0 : vector<1x16x128xf32> to vector<16x128xf32>
    %cst = arith.constant dense<0.000000e+00> : vector<16x128xf32>
    %5 = tpu.matmul %4, %2, %cst {dimension_numbers = #tpu.dot_dimension_numbers<[1], [0], [0], [1], [0, 0, 1, 1], [], []>} : vector<16x128xf32>, vector<128x128xf32>, vector<16x128xf32> -> vector<16x128xf32>
    %6 = vector.broadcast %3 : vector<1x128xf32> to vector<16x128xf32>
    %7 = arith.addf %5, %6 : vector<16x128xf32>
    %8 = vector.shape_cast %7 : vector<16x128xf32> to vector<1x16x128xf32>
    %cst_9 = arith.constant dense<0.000000e+00> : vector<1x16x128xf32>
    %9 = tpu.matmul %8, %1, %cst_9 {dimension_numbers = #tpu.dot_dimension_numbers<[2], [2], [1], [1], [0, 0, 0, 1, 1, 1], [0], [0]>} : vector<1x16x128xf32>, vector<1x128x128xf32>, vector<1x16x128xf32> -> vector<1x16x128xf32>
    %c0_10 = arith.constant 0 : index
    %c0_11 = arith.constant 0 : index
    %c0_12 = arith.constant 0 : index
    %10 = vector.load %arg7[%c0_10, %c0_11, %c0_12] : memref<1x16x128xf32, #tpu.memory_space<vmem>>, vector<1x16x128xf32>
    tpu.vector_store %arg7[%c0_10, %c0_11, %c0_12], %9 {strides = array<i32>} : memref<1x16x128xf32, #tpu.memory_space<vmem>>, vector<1x16x128xf32>,
    %11 = tpu.iota {dimensions = array<i32: 2>} : vector<1x16x128xi32>
    %c8_i32 = arith.constant 8 : i32
    %12 = vector.broadcast %c8_i32 : i32 to vector<1x16x128xi32>
    %13 = arith.cmpi slt, %11, %12 : vector<1x16x128xi32>
    %cst_13 = arith.constant -1.000000e+30 : f32
    %14 = vector.broadcast %cst_13 : f32 to vector<1x16x128xf32>
    %15 = arith.select %13, %9, %14 : vector<1x16x128xi1>, vector<1x16x128xf32>
    %cst_14 = arith.constant dense<0xFF800000> : vector<1x16xf32>
    %16 = vector.multi_reduction <maximumf>, %15, %cst_14 [2] : vector<1x16x128xf32> to vector<1x16xf32>
    %17 = vector.shape_cast %16 : vector<1x16xf32> to vector<1x16x1xf32>
    %18 = vector.broadcast %17 : vector<1x16x1xf32> to vector<1x16x128xf32>
    %19 = arith.subf %15, %18 : vector<1x16x128xf32>
    %20 = math.exp %19 : vector<1x16x128xf32>
    %cst_15 = arith.constant dense<0.000000e+00> : vector<1x16xf32>
    %21 = vector.multi_reduction <add>, %20, %cst_15 [2] : vector<1x16x128xf32> to vector<1x16xf32>
    %22 = vector.shape_cast %21 : vector<1x16xf32> to vector<1x16x1xf32>
    %cst_16 = arith.constant dense<0.000000e+00> : vector<1x16x128xf32>
    %23 = tpu.matmul %20, %1, %cst_16 {dimension_numbers = #tpu.dot_dimension_numbers<[2], [1], [1], [2], [0, 0, 0, 1, 1, 2], [0], [0]>} : vector<1x16x128xf32>, vector<1x128x128xf32>, vector<1x16x128xf32> -> vector<1x16x128xf32>
    %24 = tpu.reciprocal %22 {approx = true} : vector<1x16x1xf32> -> vector<1x16x1xf32>
    %25 = vector.broadcast %24 : vector<1x16x1xf32> to vector<1x16x128xf32>
    %26 = arith.mulf %23, %25 : vector<1x16x128xf32>
    %c0_17 = arith.constant 0 : index
    %c0_18 = arith.constant 0 : index
    %c0_19 = arith.constant 0 : index
    %27 = vector.load %arg5[%c0_17, %c0_18, %c0_19] : memref<1x16x128xf32, #tpu.memory_space<vmem>>, vector<1x16x128xf32>
    tpu.vector_store %arg5[%c0_17, %c0_18, %c0_19], %26 {strides = array<i32>} : memref<1x16x128xf32, #tpu.memory_space<vmem>>, vector<1x16x128xf32>,
    %cst_20 = arith.constant dense<0xFF800000> : vector<1x128xf32>
    %28 = vector.multi_reduction <maximumf>, %15, %cst_20 [1] : vector<1x16x128xf32> to vector<1x128xf32>
    %29 = vector.shape_cast %28 : vector<1x128xf32> to vector<1x1x128xf32>
    %30 = vector.broadcast %29 : vector<1x1x128xf32> to vector<1x16x128xf32>
    %31 = arith.subf %15, %30 : vector<1x16x128xf32>
    %32 = math.exp %31 : vector<1x16x128xf32>
    %cst_21 = arith.constant dense<0.000000e+00> : vector<1x128xf32>
    %33 = vector.multi_reduction <add>, %32, %cst_21 [1] : vector<1x16x128xf32> to vector<1x128xf32>
    %34 = vector.shape_cast %33 : vector<1x128xf32> to vector<1x1x128xf32>
    %35 = tpu.reciprocal %34 {approx = true} : vector<1x1x128xf32> -> vector<1x1x128xf32>
    %36 = vector.broadcast %35 : vector<1x1x128xf32> to vector<1x16x128xf32>
    %37 = arith.mulf %32, %36 : vector<1x16x128xf32>
    %cst_22 = arith.constant dense<0.000000e+00> : vector<1x128x128xf32>
    %38 = tpu.matmul %37, %0, %cst_22 {dimension_numbers = #tpu.dot_dimension_numbers<[1], [1], [2], [2], [0, 0, 0, 2, 1, 2], [0], [0]>} : vector<1x16x128xf32>, vector<1x16x128xf32>, vector<1x128x128xf32> -> vector<1x128x128xf32>
    %c0_23 = arith.constant 0 : index
    %c0_24 = arith.constant 0 : index
    %c0_25 = arith.constant 0 : index
    %39 = vector.load %arg6[%c0_23, %c0_24, %c0_25] : memref<1x128x128xf32, #tpu.memory_space<vmem>>, vector<1x128x128xf32>
    tpu.vector_store %arg6[%c0_23, %c0_24, %c0_25], %38 {strides = array<i32>} : memref<1x128x128xf32, #tpu.memory_space<vmem>>, vector<1x128x128xf32>,
    return
  }
  func.func @transform_0(%arg0: i32) -> (i32, i32, i32) {
    %c0_i32 = arith.constant 0 : i32
    %c0_i32_0 = arith.constant 0 : i32
    %c0_i32_1 = arith.constant 0 : i32
    return %arg0, %c0_i32, %c0_i32_0 : i32, i32, i32
  }
  func.func @transform_1(%arg0: i32) -> (i32, i32, i32) {
    %c0_i32 = arith.constant 0 : i32
    %c0_i32_0 = arith.constant 0 : i32
    %c0_i32_1 = arith.constant 0 : i32
    return %arg0, %c0_i32, %c0_i32_0 : i32, i32, i32
  }
  func.func @transform_2(%arg0: i32) -> (i32, i32) {
    %c0_i32 = arith.constant 0 : i32
    %c0_i32_0 = arith.constant 0 : i32
    %c0_i32_1 = arith.constant 0 : i32
    return %c0_i32, %c0_i32_0 : i32, i32
  }
  func.func @transform_3(%arg0: i32) -> (i32, i32) {
    %c0_i32 = arith.constant 0 : i32
    %c0_i32_0 = arith.constant 0 : i32
    %c0_i32_1 = arith.constant 0 : i32
    return %c0_i32, %c0_i32_0 : i32, i32
  }
  func.func @transform_4(%arg0: i32) -> (i32, i32, i32) {
    %c0_i32 = arith.constant 0 : i32
    %c0_i32_0 = arith.constant 0 : i32
    %c0_i32_1 = arith.constant 0 : i32
    return %arg0, %c0_i32, %c0_i32_0 : i32, i32, i32
  }
  func.func @transform_5(%arg0: i32) -> (i32, i32, i32) {
    %c0_i32 = arith.constant 0 : i32
    %c0_i32_0 = arith.constant 0 : i32
    %c0_i32_1 = arith.constant 0 : i32
    return %arg0, %c0_i32, %c0_i32_0 : i32, i32, i32
  }
  func.func @transform_6(%arg0: i32) -> (i32, i32, i32) {
    %c0_i32 = arith.constant 0 : i32
    %c0_i32_0 = arith.constant 0 : i32
    %c0_i32_1 = arith.constant 0 : i32
    return %arg0, %c0_i32, %c0_i32_0 : i32, i32, i32
  }
}

</mosaic_0001>

<llo_original>
// kernel: tpu_custom_call.1
$region0: #{tpu_custom_call.1}
  #allocation0 [shape = 'u32[]', space=smem, size = 0x4, offset = 0x4, fixed_abs, tag = 'smem constant byte address 0x4 - core index']
  #allocation1 [shape = 'u32[144,128]{1,0:T(1,128)}', space=vmem, size = 0x12000, scoped, tag = 'internal scratch']
  %s0 = inlined_call_operand.hbm [shape: f32[2,16,128], index: 0, kind: input, shape index: {}]
  %s1 = inlined_call_operand.hbm [shape: f32[2,128,128], index: 1, kind: input, shape index: {}]
  %s2 = inlined_call_operand.hbm [shape: f32[128,128], index: 2, kind: input, shape index: {}]
  %s3 = inlined_call_operand.vmem [shape: f32[1,128], index: 3, kind: input, shape index: {}]
  %s4 = inlined_call_operand.hbm [shape: f32[2,16,128], index: 4, kind: output, shape index: {0}]
  %s5 = inlined_call_operand.hbm [shape: f32[2,128,128], index: 5, kind: output, shape index: {1}]
  %s6 = inlined_call_operand.hbm [shape: f32[2,16,128], index: 6, kind: output, shape index: {2}]
  %7 = xla_tuple %s4, %s5, %s6
  %s8 = sld [smem:[#allocation0]]
  $region77: #{tpu_custom_call.1} parent=0
    _
  %s10 = ssub.s32 1, %s8
  %s11 = scalar_select 0, %s10, %s8
  $region1: #{tpu_custom_call.1} parent=0
    #allocation2 [shape = 'u8[16384]{0}', space=vmem, size = 0x4000, scoped, tag = 'input window, operand 0']
    #allocation3 [shape = 's32[2]{0}', space=sflag, size = 0x8, scoped, tag = 'scoped memory for tpu_custom_call.1']
    #allocation4 [shape = 's32[2]{0}', space=sflag, size = 0x8, scoped, tag = 'scoped memory for tpu_custom_call.1']
    #allocation5 [shape = 'u8[131072]{0}', space=vmem, size = 0x20000, scoped, tag = 'input window, operand 1']
    #allocation6 [shape = 's32[2]{0}', space=sflag, size = 0x8, scoped, tag = 'scoped memory for tpu_custom_call.1']
    #allocation7 [shape = 'u8[65536]{0}', space=vmem, size = 0x10000, scoped, tag = 'input window, operand 2, single buffered']
    #allocation8 [shape = 'u8[16384]{0}', space=vmem, size = 0x4000, scoped, tag = 'output window, operand 0']
    #allocation9 [shape = 'u8[131072]{0}', space=vmem, size = 0x20000, scoped, tag = 'output window, operand 1']
    #allocation10 [shape = 's32[2]{0}', space=sflag, size = 0x8, scoped, tag = 'scoped memory for tpu_custom_call.1']
    #allocation11 [shape = 'u8[16384]{0}', space=vmem, size = 0x4000, scoped, tag = 'output window, operand 2']
    %12 = vsyncpa [#allocation3], 0
    %s13 = scalar_lea.sflag [#allocation3], 1
    %14 = vsyncpa %s13, 0
    %15 = vsyncpa [#allocation6], 0
    %s16 = scalar_lea.sflag [#allocation6], 1
    %17 = vsyncpa %s16, 0
    %18 = vsyncpa [#allocation4], 0
    %s19 = scalar_lea.sflag [#allocation4], 1
    %20 = vsyncpa %s19, 0
    %21 = vsyncpa [#allocation10], 0
    %s22 = scalar_lea.sflag [#allocation10], 1
    %23 = vsyncpa %s22, 0
    loop: start=0, step=1, limit=4
    $region2: #{tpu_custom_call.1} parent=1 // loop_pre_header
      _
    $region3: #{tpu_custom_call.1} parent=1 // loop_header
      %s25 = sphi 0, %s29
      %p26 = scmp.ge.s32.totalorder %s25, 4
      %s35 = sphi 0, %s37
      %s38 = sphi 0, %s35
      %s39 = sphi 0, %s38
      %s55 = sphi 0, %s39
      %s61 = sphi 0, %s63
      %s64 = sphi 0, %s61
      %s65 = sphi 0, %s64
      %s81 = sphi 0, %s65
      %s85 = sphi 0, %s85
      %s87 = sphi 0, %s85
      %s88 = sphi 0, %s87
      %s102 = sphi 0, %s88
      %s106 = sphi 0, %s106
      %s108 = sphi 0, %s106
      %s109 = sphi 0, %s108
      %s123 = sphi 0, %s109
      %s129 = sphi 0, %s131
      %s132 = sphi 0, %s129
      %s133 = sphi 0, %s132
      %s149 = sphi 0, %s133
      %s155 = sphi 0, %s157
      %s158 = sphi 0, %s155
      %s159 = sphi 0, %s158
      %s175 = sphi 0, %s159
      %s181 = sphi 0, %s183
      %s184 = sphi 0, %s181
      %s185 = sphi 0, %s184
      %s201 = sphi 0, %s185
    $region4: #{tpu_custom_call.1} parent=1 // loop_header_branch
      %28 = sbr.rel (%p26) target = $region8
    $region5: #{tpu_custom_call.1} parent=1 // loop_body
      %s30 = ssub.s32 %s25, 1
      %s31 = ssub.s32 %s25, 2
      %s32 = sadd.s32 %s25, 1
      %s33 = ssub.s32 %s25, %s32
      %p34 = scmp.eq.s32.totalorder %s33, 0
      %s36 = sadd.s32 %s35, 1
      %s37 = scalar_select %p34, %s35, %s36
      %p40 = pneg %p34
      %p41 = scmp.eq.s32.totalorder %s25, 1
      %p42 = por %p40, %p41
      %p43 = scmp.ne.s32.totalorder %s35, %s38
      %p44 = scmp.eq.s32.totalorder %s25, 0
      %p45 = por %p43, %p44
      %p46 = scmp.ne.s32.totalorder %s35, %s38
      %p47 = scmp.eq.s32.totalorder %s30, 1
      %p48 = por %p46, %p47
      %p49 = scmp.ne.s32.totalorder %s38, %s39
      %p50 = scmp.eq.s32.totalorder %s30, 0
      %p51 = por %p49, %p50
      %p52 = scmp.ne.s32.totalorder %s38, %s39
      %p53 = scmp.eq.s32.totalorder %s31, 1
      %p54 = por %p52, %p53
      %p56 = scmp.ne.s32.totalorder %s39, %s55
      %p57 = scmp.eq.s32.totalorder %s31, 0
      %p58 = por %p56, %p57
      %s59 = ssub.s32 %s25, %s32
      %p60 = scmp.eq.s32.totalorder %s59, 0
      %s62 = sadd.s32 %s61, 1
      %s63 = scalar_select %p60, %s61, %s62
      %p66 = pneg %p60
      %p67 = scmp.eq.s32.totalorder %s25, 1
      %p68 = por %p66, %p67
      %p69 = scmp.ne.s32.totalorder %s61, %s64
      %p70 = scmp.eq.s32.totalorder %s25, 0
      %p71 = por %p69, %p70
      %p72 = scmp.ne.s32.totalorder %s61, %s64
      %p73 = scmp.eq.s32.totalorder %s30, 1
      %p74 = por %p72, %p73
      %p75 = scmp.ne.s32.totalorder %s64, %s65
      %p76 = scmp.eq.s32.totalorder %s30, 0
      %p77 = por %p75, %p76
      %p78 = scmp.ne.s32.totalorder %s64, %s65
      %p79 = scmp.eq.s32.totalorder %s31, 1
      %p80 = por %p78, %p79
      %p82 = scmp.ne.s32.totalorder %s65, %s81
      %p83 = scmp.eq.s32.totalorder %s31, 0
      %p84 = por %p82, %p83
      %s86 = sadd.s32 %s85, 1
      %p89 = scmp.eq.s32.totalorder %s25, 1
      %p90 = scmp.ne.s32.totalorder %s85, %s87
      %p91 = scmp.eq.s32.totalorder %s25, 0
      %p92 = por %p90, %p91
      %p93 = scmp.ne.s32.totalorder %s85, %s87
      %p94 = scmp.eq.s32.totalorder %s30, 1
      %p95 = por %p93, %p94
      %p96 = scmp.ne.s32.totalorder %s87, %s88
      %p97 = scmp.eq.s32.totalorder %s30, 0
      %p98 = por %p96, %p97
      %p99 = scmp.ne.s32.totalorder %s87, %s88
      %p100 = scmp.eq.s32.totalorder %s31, 1
      %p101 = por %p99, %p100
      %p103 = scmp.ne.s32.totalorder %s88, %s102
      %p104 = scmp.eq.s32.totalorder %s31, 0
      %p105 = por %p103, %p104
      %s107 = sadd.s32 %s106, 1
      %p110 = scmp.eq.s32.totalorder %s25, 1
      %p111 = scmp.ne.s32.totalorder %s106, %s108
      %p112 = scmp.eq.s32.totalorder %s25, 0
      %p113 = por %p111, %p112
      %p114 = scmp.ne.s32.totalorder %s106, %s108
      %p115 = scmp.eq.s32.totalorder %s30, 1
      %p116 = por %p114, %p115
      %p117 = scmp.ne.s32.totalorder %s108, %s109
      %p118 = scmp.eq.s32.totalorder %s30, 0
      %p119 = por %p117, %p118
      %p120 = scmp.ne.s32.totalorder %s108, %s109
      %p121 = scmp.eq.s32.totalorder %s31, 1
      %p122 = por %p120, %p121
      %p124 = scmp.ne.s32.totalorder %s109, %s123
      %p125 = scmp.eq.s32.totalorder %s31, 0
      %p126 = por %p124, %p125
      %s127 = ssub.s32 %s25, %s32
      %p128 = scmp.eq.s32.totalorder %s127, 0
      %s130 = sadd.s32 %s129, 1
      %s131 = scalar_select %p128, %s129, %s130
      %p134 = pneg %p128
      %p135 = scmp.eq.s32.totalorder %s25, 1
      %p136 = por %p134, %p135
      %p137 = scmp.ne.s32.totalorder %s129, %s132
      %p138 = scmp.eq.s32.totalorder %s25, 0
      %p139 = por %p137, %p138
      %p140 = scmp.ne.s32.totalorder %s129, %s132
      %p141 = scmp.eq.s32.totalorder %s30, 1
      %p142 = por %p140, %p141
      %p143 = scmp.ne.s32.totalorder %s132, %s133
      %p144 = scmp.eq.s32.totalorder %s30, 0
      %p145 = por %p143, %p144
      %p146 = scmp.ne.s32.totalorder %s132, %s133
      %p147 = scmp.eq.s32.totalorder %s31, 1
      %p148 = por %p146, %p147
      %p150 = scmp.ne.s32.totalorder %s133, %s149
      %p151 = scmp.eq.s32.totalorder %s31, 0
      %p152 = por %p150, %p151
      %s153 = ssub.s32 %s25, %s32
      %p154 = scmp.eq.s32.totalorder %s153, 0
      %s156 = sadd.s32 %s155, 1
      %s157 = scalar_select %p154, %s155, %s156
      %p160 = pneg %p154
      %p161 = scmp.eq.s32.totalorder %s25, 1
      %p162 = por %p160, %p161
      %p163 = scmp.ne.s32.totalorder %s155, %s158
      %p164 = scmp.eq.s32.totalorder %s25, 0
      %p165 = por %p163, %p164
      %p166 = scmp.ne.s32.totalorder %s155, %s158
      %p167 = scmp.eq.s32.totalorder %s30, 1
      %p168 = por %p166, %p167
      %p169 = scmp.ne.s32.totalorder %s158, %s159
      %p170 = scmp.eq.s32.totalorder %s30, 0
      %p171 = por %p169, %p170
      %p172 = scmp.ne.s32.totalorder %s158, %s159
      %p173 = scmp.eq.s32.totalorder %s31, 1
      %p174 = por %p172, %p173
      %p176 = scmp.ne.s32.totalorder %s159, %s175
      %p177 = scmp.eq.s32.totalorder %s31, 0
      %p178 = por %p176, %p177
      %s179 = ssub.s32 %s25, %s32
      %p180 = scmp.eq.s32.totalorder %s179, 0
      %s182 = sadd.s32 %s181, 1
      %s183 = scalar_select %p180, %s181, %s182
      %p186 = pneg %p180
      %p187 = scmp.eq.s32.totalorder %s25, 1
      %p188 = por %p186, %p187
      %p189 = scmp.ne.s32.totalorder %s181, %s184
      %p190 = scmp.eq.s32.totalorder %s25, 0
      %p191 = por %p189, %p190
      %p192 = scmp.ne.s32.totalorder %s181, %s184
      %p193 = scmp.eq.s32.totalorder %s30, 1
      %p194 = por %p192, %p193
      %p195 = scmp.ne.s32.totalorder %s184, %s185
      %p196 = scmp.eq.s32.totalorder %s30, 0
      %p197 = por %p195, %p196
      %p198 = scmp.ne.s32.totalorder %s184, %s185
      %p199 = scmp.eq.s32.totalorder %s31, 1
      %p200 = por %p198, %p199
      %p202 = scmp.ne.s32.totalorder %s185, %s201
      %p203 = scmp.eq.s32.totalorder %s31, 0
      %p204 = por %p202, %p203
      %p205 = scmp.le.s32.totalorder 1, %s25
      %p206 = scmp.lt.s32.totalorder %s25, 3
      %p207 = pnand %p205, %p206
      %p208 = pneg %p207
      // Predicated region
      $region9: #{tpu_custom_call.1} parent=5 // pred_check
        _
      $region10: #{tpu_custom_call.1} parent=5 // pred_check_branch
        %210 = sbr.rel (%p207) target = $region12
      $region11: #{tpu_custom_call.1} parent=5 // pred_region
        %s211 = ssub.s32 %s25, 1
        // Predicated region
        $region13: #{tpu_custom_call.1} parent=11 // pred_check
          %p212 = pneg %p98
        $region14: #{tpu_custom_call.1} parent=11 // pred_check_branch
          %214 = sbr.rel (%p212) target = $region16
        $region15: #{tpu_custom_call.1} parent=11 // pred_region
          %s216 = ssub.s32 2048, 2048
          %217 = vsyncadd [#allocation6], %s216
          %s218 = sshll.u32 [#allocation7], 4
          %s219 = int_to_ptr.vmem [resolvable:$true] %s218
          %224 = dma.hbm_to_vmem [thread:$0]  %s2, 2048, %s219, [#allocation6], 128, 128, 8
        $region16: #{tpu_custom_call.1} parent=11 // pred_fallthru
          _
        // Predicated region
        $region17: #{tpu_custom_call.1} parent=11 // pred_check
          %p225 = pneg %p119
        $region18: #{tpu_custom_call.1} parent=11 // pred_check_branch
          %227 = sbr.rel (%p225) target = $region20
        $region19: #{tpu_custom_call.1} parent=11 // pred_region
          _
        $region20: #{tpu_custom_call.1} parent=11 // pred_fallthru
          _
      $region12: #{tpu_custom_call.1} parent=5 // pred_fallthru
        _
      %p228 = scmp.lt.s32.totalorder %s25, 2
      // Predicated region
      $region21: #{tpu_custom_call.1} parent=5 // pred_check
        %p229 = pneg %p228
      $region22: #{tpu_custom_call.1} parent=5 // pred_check_branch
        %231 = sbr.rel (%p229) target = $region24
      $region23: #{tpu_custom_call.1} parent=5 // pred_region
        // Predicated region
        $region25: #{tpu_custom_call.1} parent=23 // pred_check
          %p232 = pneg %p45
        $region26: #{tpu_custom_call.1} parent=23 // pred_check_branch
          %234 = sbr.rel (%p232) target = $region28
        $region27: #{tpu_custom_call.1} parent=23 // pred_region
          %s235 = sand.u32 %s35, 1
          %s236 = scalar_lea.sflag [#allocation3], %s235
          %s237 = sand.u32 %s35, 1
          %s238 = smul.addr %s237, 16
          %s239 = scalar_lea.vmem [#allocation2], %s238
          %s241 = ssub.s32 256, 256
          %242 = vsyncadd %s236, %s241
          %s243 = smul.addr %s25, 2
          %s244 = smul.addr %s243, 128
          %s245 = scalar_lea.hbm %s0, %s244
          %s246 = sshll.u32 %s239, 4
          %s247 = int_to_ptr.vmem [resolvable:$true] %s246
          %252 = dma.hbm_to_vmem [thread:$0]  %s245, 256, %s247, %s236, 128, 128, 8
        $region28: #{tpu_custom_call.1} parent=23 // pred_fallthru
          _
        // Predicated region
        $region29: #{tpu_custom_call.1} parent=23 // pred_check
          %p253 = pneg %p71
        $region30: #{tpu_custom_call.1} parent=23 // pred_check_branch
          %255 = sbr.rel (%p253) target = $region32
        $region31: #{tpu_custom_call.1} parent=23 // pred_region
          %s256 = sand.u32 %s25, 1
          %s257 = scalar_lea.sflag [#allocation6], %s256
          %s258 = sand.u32 %s61, 1
          %s259 = smul.addr %s258, 128
          %s260 = scalar_lea.vmem [#allocation5], %s259
          %s262 = ssub.s32 2048, 2048
          %263 = vsyncadd %s257, %s262
          %s264 = smul.addr %s25, 16
          %s265 = smul.addr %s264, 128
          %s266 = scalar_lea.hbm %s1, %s265
          %s267 = sshll.u32 %s260, 4
          %s268 = int_to_ptr.vmem [resolvable:$true] %s267
          %273 = dma.hbm_to_vmem [thread:$0]  %s266, 2048, %s268, %s257, 128, 128, 8
        $region32: #{tpu_custom_call.1} parent=23 // pred_fallthru
          _
      $region24: #{tpu_custom_call.1} parent=5 // pred_fallthru
        _
      %p274 = scmp.le.s32.totalorder 1, %s25
      %p275 = scmp.lt.s32.totalorder %s25, 3
      %p276 = pnand %p274, %p275
      %p277 = pneg %p276
      // Predicated region
      $region33: #{tpu_custom_call.1} parent=5 // pred_check
        _
      $region34: #{tpu_custom_call.1} parent=5 // pred_check_branch
        %279 = sbr.rel (%p276) target = $region36
      $region35: #{tpu_custom_call.1} parent=5 // pred_region
        %s280 = ssub.s32 %s25, 1
        %s281 = sand.u32 %s38, 1
        %s282 = scalar_lea.sflag [#allocation3], %s281
        %s283 = sand.u32 %s38, 1
        %s284 = smul.addr %s283, 16
        %s285 = scalar_lea.vmem [#allocation2], %s284
        // Predicated region
        $region37: #{tpu_custom_call.1} parent=35 // pred_check
          %p286 = pneg %p51
        $region38: #{tpu_custom_call.1} parent=35 // pred_check_branch
          %288 = sbr.rel (%p286) target = $region40
        $region39: #{tpu_custom_call.1} parent=35 // pred_region
          %289 = dma.done %s282, 256
        $region40: #{tpu_custom_call.1} parent=35 // pred_fallthru
          _
        %s290 = sand.u32 %s30, 1
        %s291 = scalar_lea.sflag [#allocation6], %s290
        %s292 = sand.u32 %s64, 1
        %s293 = smul.addr %s292, 128
        %s294 = scalar_lea.vmem [#allocation5], %s293
        // Predicated region
        $region41: #{tpu_custom_call.1} parent=35 // pred_check
          %p295 = pneg %p77
        $region42: #{tpu_custom_call.1} parent=35 // pred_check_branch
          %297 = sbr.rel (%p295) target = $region44
        $region43: #{tpu_custom_call.1} parent=35 // pred_region
          %298 = dma.done %s291, 2048
        $region44: #{tpu_custom_call.1} parent=35 // pred_fallthru
          _
        // Predicated region
        $region45: #{tpu_custom_call.1} parent=35 // pred_check
          %p299 = pneg %p98
        $region46: #{tpu_custom_call.1} parent=35 // pred_check_branch
          %301 = sbr.rel (%p299) target = $region48
        $region47: #{tpu_custom_call.1} parent=35 // pred_region
          %302 = dma.done [#allocation6], 2048
        $region48: #{tpu_custom_call.1} parent=35 // pred_fallthru
          _
        %s303 = sand.u32 %s38, 1
        %s304 = scalar_lea.sflag [#allocation3], %s303
        %s305 = sand.u32 %s38, 1
        %s306 = smul.addr %s305, 16
        %s307 = scalar_lea.vmem [#allocation2], %s306
        %p308 = pneg %p51
        %p309 = pneg %p48
        %s310 = sand.u32 %s30, 1
        %s311 = scalar_lea.sflag [#allocation6], %s310
        %s312 = sand.u32 %s64, 1
        %s313 = smul.addr %s312, 128
        %s314 = scalar_lea.vmem [#allocation5], %s313
        %p315 = pneg %p77
        %p316 = pneg %p74
        %p317 = pneg %p98
        %p318 = pneg %p95
        %p319 = pneg %p119
        %p320 = pneg %p116
        %p321 = pneg %p145
        %p322 = pneg %p142
        %s323 = sand.u32 %s132, 1
        %s324 = scalar_lea.sflag [#allocation4], %s323
        %s325 = sand.u32 %s132, 1
        %s326 = smul.addr %s325, 16
        %s327 = scalar_lea.vmem [#allocation8], %s326
        %p328 = pneg %p171
        %p329 = pneg %p168
        %s330 = sand.u32 %s30, 1
        %s331 = scalar_lea.sflag [#allocation10], %s330
        %s332 = sand.u32 %s158, 1
        %s333 = smul.addr %s332, 128
        %s334 = scalar_lea.vmem [#allocation9], %s333
        %p335 = pneg %p197
        %p336 = pneg %p194
        %s337 = sand.u32 %s30, 1
        %s338 = scalar_lea.sflag [#allocation10], %s337
        %s339 = sand.u32 %s184, 1
        %s340 = smul.addr %s339, 16
        %s341 = scalar_lea.vmem [#allocation11], %s340
        %v342 = vld [vmem:[%s285] sm:$0xff]
        %v343 = vld [vmem:[%s285 + $0x8] sm:$0xff]
        %v344 = vld [vmem:[%s294] sm:$0xff]
        %v345 = vld [vmem:[%s294 + $0x8] sm:$0xff]
        %v346 = vld [vmem:[%s294 + $0x10] sm:$0xff]
        %v347 = vld [vmem:[%s294 + $0x18] sm:$0xff]
        %v348 = vld [vmem:[%s294 + $0x20] sm:$0xff]
        %v349 = vld [vmem:[%s294 + $0x28] sm:$0xff]
        %v350 = vld [vmem:[%s294 + $0x30] sm:$0xff]
        %v351 = vld [vmem:[%s294 + $0x38] sm:$0xff]
        %v352 = vld [vmem:[%s294 + $0x40] sm:$0xff]
        %v353 = vld [vmem:[%s294 + $0x48] sm:$0xff]
        %v354 = vld [vmem:[%s294 + $0x50] sm:$0xff]
        %v355 = vld [vmem:[%s294 + $0x58] sm:$0xff]
        %v356 = vld [vmem:[%s294 + $0x60] sm:$0xff]
        %v357 = vld [vmem:[%s294 + $0x68] sm:$0xff]
        %v358 = vld [vmem:[%s294 + $0x70] sm:$0xff]
        %v359 = vld [vmem:[%s294 + $0x78] sm:$0xff]
        %v360 = vld [vmem:[#allocation7] sm:$0xff]
        %v361 = vld [vmem:[#allocation7 + $0x8] sm:$0xff]
        %v362 = vld [vmem:[#allocation7 + $0x10] sm:$0xff]
        %v363 = vld [vmem:[#allocation7 + $0x18] sm:$0xff]
        %v364 = vld [vmem:[#allocation7 + $0x20] sm:$0xff]
        %v365 = vld [vmem:[#allocation7 + $0x28] sm:$0xff]
        %v366 = vld [vmem:[#allocation7 + $0x30] sm:$0xff]
        %v367 = vld [vmem:[#allocation7 + $0x38] sm:$0xff]
        %v368 = vld [vmem:[#allocation7 + $0x40] sm:$0xff]
        %v369 = vld [vmem:[#allocation7 + $0x48] sm:$0xff]
        %v370 = vld [vmem:[#allocation7 + $0x50] sm:$0xff]
        %v371 = vld [vmem:[#allocation7 + $0x58] sm:$0xff]
        %v372 = vld [vmem:[#allocation7 + $0x60] sm:$0xff]
        %v373 = vld [vmem:[#allocation7 + $0x68] sm:$0xff]
        %v374 = vld [vmem:[#allocation7 + $0x70] sm:$0xff]
        %v375 = vld [vmem:[#allocation7 + $0x78] sm:$0xff]
        %v376 = vld [vmem:[%s3] sm:$0x1]
        %v378 = vlaneseq
        %v379 = vshrl.u32 %v378, 7
        %v380 = vsub.s32 0, %v379
        %v381 = vrot.slane %v376, %v380
        %383 = vmatprep.subr.mxu0 0.0
        %384 = vmatpush1.msra.mxu0 %v360
        %385 = vmatprep.subr.mxu0 0.0
        %386 = vmatpush1.msra.mxu0 %v361
        %387 = vmatprep.subr.mxu0 0.0
        %388 = vmatpush1.msra.mxu0 %v362
        %389 = vmatprep.subr.mxu0 0.0
        %390 = vmatpush1.msra.mxu0 %v363
        %391 = vmatprep.subr.mxu0 0.0
        %392 = vmatpush1.msra.mxu0 %v364
        %393 = vmatprep.subr.mxu0 0.0
        %394 = vmatpush1.msra.mxu0 %v365
        %395 = vmatprep.subr.mxu0 0.0
        %396 = vmatpush1.msra.mxu0 %v366
        %397 = vmatprep.subr.mxu0 0.0
        %398 = vmatpush1.msra.mxu0 %v367
        %399 = vmatprep.subr.mxu0 0.0
        %400 = vmatpush1.msra.mxu0 %v368
        %401 = vmatprep.subr.mxu0 0.0
        %402 = vmatpush1.msra.mxu0 %v369
        %403 = vmatprep.subr.mxu0 0.0
        %404 = vmatpush1.msra.mxu0 %v370
        %405 = vmatprep.subr.mxu0 0.0
        %406 = vmatpush1.msra.mxu0 %v371
        %407 = vmatprep.subr.mxu0 0.0
        %408 = vmatpush1.msra.mxu0 %v372
        %409 = vmatprep.subr.mxu0 0.0
        %410 = vmatpush1.msra.mxu0 %v373
        %411 = vmatprep.subr.mxu0 0.0
        %412 = vmatpush1.msra.mxu0 %v374
        %413 = vmatprep.subr.mxu0 0.0
        %414 = vmatpush1.msra.mxu0 %v375
        %415 = vmatprep.subr.mxu0 0.0
        %416 = vmatpush1.msra.mxu0 0.0
        %417 = vmatprep.subr.mxu0 0.0
        %418 = vmatpush1.msra.mxu0 0.0
        %419 = vmatprep.subr.mxu0 0.0
        %420 = vmatpush1.msra.mxu0 0.0
        %421 = vmatprep.subr.mxu0 0.0
        %422 = vmatpush1.msra.mxu0 0.0
        %423 = vmatprep.subr.mxu0 0.0
        %424 = vmatpush1.msra.mxu0 0.0
        %425 = vmatprep.subr.mxu0 0.0
        %426 = vmatpush1.msra.mxu0 0.0
        %427 = vmatprep.subr.mxu0 0.0
        %428 = vmatpush1.msra.mxu0 0.0
        %429 = vmatprep.subr.mxu0 0.0
        %430 = vmatpush1.msra.mxu0 0.0
        %431 = vmatprep.subr.mxu0 0.0
        %432 = vmatpush1.msra.mxu0 0.0
        %433 = vmatprep.subr.mxu0 0.0
        %434 = vmatpush1.msra.mxu0 0.0
        %435 = vmatprep.subr.mxu0 0.0
        %436 = vmatpush1.msra.mxu0 0.0
        %437 = vmatprep.subr.mxu0 0.0
        %438 = vmatpush1.msra.mxu0 0.0
        %439 = vmatprep.subr.mxu0 0.0
        %440 = vmatpush1.msra.mxu0 0.0
        %441 = vmatprep.subr.mxu0 0.0
        %442 = vmatpush1.msra.mxu0 0.0
        %443 = vmatprep.subr.mxu0 0.0
        %444 = vmatpush1.msra.mxu0 0.0
        %445 = vmatprep.subr.mxu0 0.0
        %446 = vmatpush1.msra.mxu0 0.0
        %447 = vmatprep.mubr.f32.mxu0 0.0
        %448 = vmatmul.mubr.f32.gmra.mrb[0].mxu0 %v342
        %v449 = vpop.f32.mrb[0].mxu0
        %v450 = vadd.f32 %v381, %v449
        %v451 = vpop.f32.mrb[0].mxu0
        %452 = vmatprep.mubr.f32.mxu0 0.0
        %453 = vmatmul.mubr.f32.gmra.mrb[0].mxu0 %v343
        %v454 = vpop.f32.mrb[0].mxu0
        %v455 = vadd.f32 %v381, %v454
        %v456 = vpop.f32.mrb[0].mxu0
        %457 = vdwg.mxu0
        %458 = vmatprep.subr.mxu0 0.0
        %459 = vmatpush1.xpose.msra.mxu0 %v344
        %460 = vmatprep.subr.mxu0 0.0
        %461 = vmatpush1.xpose.msra.mxu0 %v345
        %462 = vmatprep.subr.mxu0 0.0
        %463 = vmatpush1.xpose.msra.mxu0 %v346
        %464 = vmatprep.subr.mxu0 0.0
        %465 = vmatpush1.xpose.msra.mxu0 %v347
        %466 = vmatprep.subr.mxu0 0.0
        %467 = vmatpush1.xpose.msra.mxu0 %v348
        %468 = vmatprep.subr.mxu0 0.0
        %469 = vmatpush1.xpose.msra.mxu0 %v349
        %470 = vmatprep.subr.mxu0 0.0
        %471 = vmatpush1.xpose.msra.mxu0 %v350
        %472 = vmatprep.subr.mxu0 0.0
        %473 = vmatpush1.xpose.msra.mxu0 %v351
        %474 = vmatprep.subr.mxu0 0.0
        %475 = vmatpush1.xpose.msra.mxu0 %v352
        %476 = vmatprep.subr.mxu0 0.0
        %477 = vmatpush1.xpose.msra.mxu0 %v353
        %478 = vmatprep.subr.mxu0 0.0
        %479 = vmatpush1.xpose.msra.mxu0 %v354
        %480 = vmatprep.subr.mxu0 0.0
        %481 = vmatpush1.xpose.msra.mxu0 %v355
        %482 = vmatprep.subr.mxu0 0.0
        %483 = vmatpush1.xpose.msra.mxu0 %v356
        %484 = vmatprep.subr.mxu0 0.0
        %485 = vmatpush1.xpose.msra.mxu0 %v357
        %486 = vmatprep.subr.mxu0 0.0
        %487 = vmatpush1.xpose.msra.mxu0 %v358
        %488 = vmatprep.subr.mxu0 0.0
        %489 = vmatpush1.xpose.msra.mxu0 %v359
        %490 = vmatprep.subr.mxu0 0.0
        %491 = vmatpush1.xpose.msra.mxu0 0.0
        %492 = vmatprep.subr.mxu0 0.0
        %493 = vmatpush1.xpose.msra.mxu0 0.0
        %494 = vmatprep.subr.mxu0 0.0
        %495 = vmatpush1.xpose.msra.mxu0 0.0
        %496 = vmatprep.subr.mxu0 0.0
        %497 = vmatpush1.xpose.msra.mxu0 0.0
        %498 = vmatprep.subr.mxu0 0.0
        %499 = vmatpush1.xpose.msra.mxu0 0.0
        %500 = vmatprep.subr.mxu0 0.0
        %501 = vmatpush1.xpose.msra.mxu0 0.0
        %502 = vmatprep.subr.mxu0 0.0
        %503 = vmatpush1.xpose.msra.mxu0 0.0
        %504 = vmatprep.subr.mxu0 0.0
        %505 = vmatpush1.xpose.msra.mxu0 0.0
        %506 = vmatprep.subr.mxu0 0.0
        %507 = vmatpush1.xpose.msra.mxu0 0.0
        %508 = vmatprep.subr.mxu0 0.0
        %509 = vmatpush1.xpose.msra.mxu0 0.0
        %510 = vmatprep.subr.mxu0 0.0
        %511 = vmatpush1.xpose.msra.mxu0 0.0
        %512 = vmatprep.subr.mxu0 0.0
        %513 = vmatpush1.xpose.msra.mxu0 0.0
        %514 = vmatprep.subr.mxu0 0.0
        %515 = vmatpush1.xpose.msra.mxu0 0.0
        %516 = vmatprep.subr.mxu0 0.0
        %517 = vmatpush1.xpose.msra.mxu0 0.0
        %518 = vmatprep.subr.mxu0 0.0
        %519 = vmatpush1.xpose.msra.mxu0 0.0
        %520 = vmatprep.subr.mxu0 0.0
        %521 = vmatpush1.xpose.msra.mxu0 0.0
        %522 = vmatprep.mubr.f32.mxu0 0.0
        %523 = vmatmul.mubr.f32.gmra.mrb[0].mxu0 %v450
        %v524 = vpop.f32.mrb[0].mxu0
        %v525 = vadd.f32 0.0, %v524
        %v526 = vpop.f32.mrb[0].mxu0
        %527 = vmatprep.mubr.f32.mxu0 0.0
        %528 = vmatmul.mubr.f32.gmra.mrb[0].mxu0 %v455
        %v529 = vpop.f32.mrb[0].mxu0
        %v530 = vadd.f32 0.0, %v529
        %v531 = vpop.f32.mrb[0].mxu0
        %532 = vdwg.mxu0
        %533 = vst [vmem:[%s341] sm:$0xff] %v525
        %534 = vst [vmem:[%s341 + $0x8] sm:$0xff] %v530
        %v535 = vlaneseq
        %v536 = vand.u32 %v535, 127
        %vm537 = vcmp.lt.s32.totalorder %v536, 8
        %v538 = vsel %vm537, %v525, -1e+30
        %v539 = vsel %vm537, %v530, -1e+30
        %540 = vmax.xlane.f32.xlu0 %v538
        %v541 = vpop.xlane.xlu0 %540
        %542 = vmax.xlane.f32.xlu0 %v539
        %v543 = vpop.xlane.xlu0 %542
        %v544 = vsub.f32 %v538, %v541
        %v545 = vsub.f32 %v539, %v543
        %v546 = vmul.f32 %v544, 1.442695
        %v547 = vpow.pop %v546
        %v548 = vmul.f32 %v545, 1.442695
        %v549 = vpow.pop %v548
        %550 = vadd.xlane.f32.xlu0 %v547
        %v551 = vpop.xlane.xlu0 %550
        %552 = vadd.xlane.f32.xlu0 %v549
        %v553 = vpop.xlane.xlu0 %552
        %554 = vmatprep.subr.mxu0 0.0
        %555 = vmatpush1.msra.mxu0 %v344
        %556 = vmatprep.subr.mxu0 0.0
        %557 = vmatpush1.msra.mxu0 %v345
        %558 = vmatprep.subr.mxu0 0.0
        %559 = vmatpush1.msra.mxu0 %v346
        %560 = vmatprep.subr.mxu0 0.0
        %561 = vmatpush1.msra.mxu0 %v347
        %562 = vmatprep.subr.mxu0 0.0
        %563 = vmatpush1.msra.mxu0 %v348
        %564 = vmatprep.subr.mxu0 0.0
        %565 = vmatpush1.msra.mxu0 %v349
        %566 = vmatprep.subr.mxu0 0.0
        %567 = vmatpush1.msra.mxu0 %v350
        %568 = vmatprep.subr.mxu0 0.0
        %569 = vmatpush1.msra.mxu0 %v351
        %570 = vmatprep.subr.mxu0 0.0
        %571 = vmatpush1.msra.mxu0 %v352
        %572 = vmatprep.subr.mxu0 0.0
        %573 = vmatpush1.msra.mxu0 %v353
        %574 = vmatprep.subr.mxu0 0.0
        %575 = vmatpush1.msra.mxu0 %v354
        %576 = vmatprep.subr.mxu0 0.0
        %577 = vmatpush1.msra.mxu0 %v355
        %578 = vmatprep.subr.mxu0 0.0
        %579 = vmatpush1.msra.mxu0 %v356
        %580 = vmatprep.subr.mxu0 0.0
        %581 = vmatpush1.msra.mxu0 %v357
        %582 = vmatprep.subr.mxu0 0.0
        %583 = vmatpush1.msra.mxu0 %v358
        %584 = vmatprep.subr.mxu0 0.0
        %585 = vmatpush1.msra.mxu0 %v359
        %586 = vmatprep.subr.mxu0 0.0
        %587 = vmatpush1.msra.mxu0 0.0
        %588 = vmatprep.subr.mxu0 0.0
        %589 = vmatpush1.msra.mxu0 0.0
        %590 = vmatprep.subr.mxu0 0.0
        %591 = vmatpush1.msra.mxu0 0.0
        %592 = vmatprep.subr.mxu0 0.0
        %593 = vmatpush1.msra.mxu0 0.0
        %594 = vmatprep.subr.mxu0 0.0
        %595 = vmatpush1.msra.mxu0 0.0
        %596 = vmatprep.subr.mxu0 0.0
        %597 = vmatpush1.msra.mxu0 0.0
        %598 = vmatprep.subr.mxu0 0.0
        %599 = vmatpush1.msra.mxu0 0.0
        %600 = vmatprep.subr.mxu0 0.0
        %601 = vmatpush1.msra.mxu0 0.0
        %602 = vmatprep.subr.mxu0 0.0
        %603 = vmatpush1.msra.mxu0 0.0
        %604 = vmatprep.subr.mxu0 0.0
        %605 = vmatpush1.msra.mxu0 0.0
        %606 = vmatprep.subr.mxu0 0.0
        %607 = vmatpush1.msra.mxu0 0.0
        %608 = vmatprep.subr.mxu0 0.0
        %609 = vmatpush1.msra.mxu0 0.0
        %610 = vmatprep.subr.mxu0 0.0
        %611 = vmatpush1.msra.mxu0 0.0
        %612 = vmatprep.subr.mxu0 0.0
        %613 = vmatpush1.msra.mxu0 0.0
        %614 = vmatprep.subr.mxu0 0.0
        %615 = vmatpush1.msra.mxu0 0.0
        %616 = vmatprep.subr.mxu0 0.0
        %617 = vmatpush1.msra.mxu0 0.0
        %618 = vmatprep.mubr.f32.mxu0 0.0
        %619 = vmatmul.mubr.f32.gmra.mrb[0].mxu0 %v547
        %v620 = vpop.f32.mrb[0].mxu0
        %v621 = vadd.f32 0.0, %v620
        %v622 = vpop.f32.mrb[0].mxu0
        %623 = vmatprep.mubr.f32.mxu0 0.0
        %624 = vmatmul.mubr.f32.gmra.mrb[0].mxu0 %v549
        %v625 = vpop.f32.mrb[0].mxu0
        %v626 = vadd.f32 0.0, %v625
        %v627 = vpop.f32.mrb[0].mxu0
        %628 = vdwg.mxu0
        %v629 = vrcp.pop %v551
        %v630 = vrcp.pop %v553
        %v631 = vmul.f32 %v621, %v629
        %v632 = vmul.f32 %v626, %v630
        %633 = vst [vmem:[%s327] sm:$0xff] %v631
        %634 = vst [vmem:[%s327 + $0x8] sm:$0xff] %v632
        %v635 = vmax.f32 %v538, %v539
        %v636 = vrot.slane %v635, 4
        %v637 = vmax.f32 %v635, %v636
        %v638 = vrot.slane %v637, 2
        %v639 = vmax.f32 %v637, %v638
        %v640 = vrot.slane %v639, 1
        %v641 = vmax.f32 %v639, %v640
        %v642 = vsub.f32 %v538, %v641
        %v643 = vsub.f32 %v539, %v641
        %v644 = vmul.f32 %v642, 1.442695
        %v645 = vpow.pop %v644
        %v646 = vmul.f32 %v643, 1.442695
        %v647 = vpow.pop %v646
        %v648 = vadd.f32 %v645, %v647
        %v649 = vrot.slane %v648, 4
        %v650 = vadd.f32 %v648, %v649
        %v651 = vrot.slane %v650, 2
        %v652 = vadd.f32 %v650, %v651
        %v653 = vrot.slane %v652, 1
        %v654 = vadd.f32 %v652, %v653
        %v655 = vrcp.pop %v654
        %v656 = vmul.f32 %v645, %v655
        %v657 = vmul.f32 %v647, %v655
        %658 = vxpose.xlu0.b32.start [1/16] %v656, 128
        %659 = vxpose.xlu0.b32.cont [2/16] %v657, 128
        %660 = vxpose.xlu0.b32.cont [3/16] 0.0, 128
        %661 = vxpose.xlu0.b32.cont [4/16] 0.0, 128
        %662 = vxpose.xlu0.b32.cont [5/16] 0.0, 128
        %663 = vxpose.xlu0.b32.cont [6/16] 0.0, 128
        %664 = vxpose.xlu0.b32.cont [7/16] 0.0, 128
        %665 = vxpose.xlu0.b32.cont [8/16] 0.0, 128
        %666 = vxpose.xlu0.b32.cont [9/16] 0.0, 128
        %667 = vxpose.xlu0.b32.cont [10/16] 0.0, 128
        %668 = vxpose.xlu0.b32.cont [11/16] 0.0, 128
        %669 = vxpose.xlu0.b32.cont [12/16] 0.0, 128
        %670 = vxpose.xlu0.b32.cont [13/16] 0.0, 128
        %671 = vxpose.xlu0.b32.cont [14/16] 0.0, 128
        %672 = vxpose.xlu0.b32.cont [15/16] 0.0, 128
        %673 = vxpose.xlu0.b32.end [16/16] 0.0, 128
        %v674 = vpop.trf.xlu0
        %v675 = vpop.trf.xlu0
        %v676 = vpop.trf.xlu0
        %v677 = vpop.trf.xlu0
        %v678 = vpop.trf.xlu0
        %v679 = vpop.trf.xlu0
        %v680 = vpop.trf.xlu0
        %v681 = vpop.trf.xlu0
        %v682 = vpop.trf.xlu0
        %v683 = vpop.trf.xlu0
        %v684 = vpop.trf.xlu0
        %v685 = vpop.trf.xlu0
        %v686 = vpop.trf.xlu0
        %v687 = vpop.trf.xlu0
        %v688 = vpop.trf.xlu0
        %v689 = vpop.trf.xlu0
        %vm690 = vcmask 130048
        %v692 = vsel %vm690, %v674, 0
        %v695 = vsel %vm690, %v675, 0
        %v698 = vsel %vm690, %v676, 0
        %v701 = vsel %vm690, %v677, 0
        %v704 = vsel %vm690, %v678, 0
        %v707 = vsel %vm690, %v679, 0
        %v710 = vsel %vm690, %v680, 0
        %v713 = vsel %vm690, %v681, 0
        %v716 = vsel %vm690, %v682, 0
        %v719 = vsel %vm690, %v683, 0
        %v722 = vsel %vm690, %v684, 0
        %v725 = vsel %vm690, %v685, 0
        %v728 = vsel %vm690, %v686, 0
        %v731 = vsel %vm690, %v687, 0
        %v734 = vsel %vm690, %v688, 0
        %v737 = vsel %vm690, %v689, 0
        %739 = vmatprep.subr.mxu0 0.0
        %740 = vmatpush1.msra.mxu0 %v342
        %741 = vmatprep.subr.mxu0 0.0
        %742 = vmatpush1.msra.mxu0 %v343
        %743 = vmatprep.subr.mxu0 0.0
        %744 = vmatpush1.msra.mxu0 0.0
        %745 = vmatprep.subr.mxu0 0.0
        %746 = vmatpush1.msra.mxu0 0.0
        %747 = vmatprep.subr.mxu0 0.0
        %748 = vmatpush1.msra.mxu0 0.0
        %749 = vmatprep.subr.mxu0 0.0
        %750 = vmatpush1.msra.mxu0 0.0
        %751 = vmatprep.subr.mxu0 0.0
        %752 = vmatpush1.msra.mxu0 0.0
        %753 = vmatprep.subr.mxu0 0.0
        %754 = vmatpush1.msra.mxu0 0.0
        %755 = vmatprep.subr.mxu0 0.0
        %756 = vmatpush1.msra.mxu0 0.0
        %757 = vmatprep.subr.mxu0 0.0
        %758 = vmatpush1.msra.mxu0 0.0
        %759 = vmatprep.subr.mxu0 0.0
        %760 = vmatpush1.msra.mxu0 0.0
        %761 = vmatprep.subr.mxu0 0.0
        %762 = vmatpush1.msra.mxu0 0.0
        %763 = vmatprep.subr.mxu0 0.0
        %764 = vmatpush1.msra.mxu0 0.0
        %765 = vmatprep.subr.mxu0 0.0
        %766 = vmatpush1.msra.mxu0 0.0
        %767 = vmatprep.subr.mxu0 0.0
        %768 = vmatpush1.msra.mxu0 0.0
        %769 = vmatprep.subr.mxu0 0.0
        %770 = vmatpush1.msra.mxu0 0.0
        %771 = vmatprep.subr.mxu0 0.0
        %772 = vmatpush1.msra.mxu0 0.0
        %773 = vmatprep.subr.mxu0 0.0
        %774 = vmatpush1.msra.mxu0 0.0
        %775 = vmatprep.subr.mxu0 0.0
        %776 = vmatpush1.msra.mxu0 0.0
        %777 = vmatprep.subr.mxu0 0.0
        %778 = vmatpush1.msra.mxu0 0.0
        %779 = vmatprep.subr.mxu0 0.0
        %780 = vmatpush1.msra.mxu0 0.0
        %781 = vmatprep.subr.mxu0 0.0
        %782 = vmatpush1.msra.mxu0 0.0
        %783 = vmatprep.subr.mxu0 0.0
        %784 = vmatpush1.msra.mxu0 0.0
        %785 = vmatprep.subr.mxu0 0.0
        %786 = vmatpush1.msra.mxu0 0.0
        %787 = vmatprep.subr.mxu0 0.0
        %788 = vmatpush1.msra.mxu0 0.0
        %789 = vmatprep.subr.mxu0 0.0
        %790 = vmatpush1.msra.mxu0 0.0
        %791 = vmatprep.subr.mxu0 0.0
        %792 = vmatpush1.msra.mxu0 0.0
        %793 = vmatprep.subr.mxu0 0.0
        %794 = vmatpush1.msra.mxu0 0.0
        %795 = vmatprep.subr.mxu0 0.0
        %796 = vmatpush1.msra.mxu0 0.0
        %797 = vmatprep.subr.mxu0 0.0
        %798 = vmatpush1.msra.mxu0 0.0
        %799 = vmatprep.subr.mxu0 0.0
        %800 = vmatpush1.msra.mxu0 0.0
        %801 = vmatprep.subr.mxu0 0.0
        %802 = vmatpush1.msra.mxu0 0.0
        %803 = vmatprep.mubr.f32.mxu0 0.0
        %804 = vmatmul.mubr.f32.gmra.mrb[0].mxu0 %v692
        %v805 = vpop.f32.mrb[0].mxu0
        %v806 = vadd.f32 0.0, %v805
        %v807 = vpop.f32.mrb[0].mxu0
        %808 = vmatprep.mubr.f32.mxu0 0.0
        %809 = vmatmul.mubr.f32.gmra.mrb[0].mxu0 %v695
        %v810 = vpop.f32.mrb[0].mxu0
        %v811 = vadd.f32 0.0, %v810
        %v812 = vpop.f32.mrb[0].mxu0
        %813 = vmatprep.mubr.f32.mxu0 0.0
        %814 = vmatmul.mubr.f32.gmra.mrb[0].mxu0 %v698
        %v815 = vpop.f32.mrb[0].mxu0
        %v816 = vadd.f32 0.0, %v815
        %v817 = vpop.f32.mrb[0].mxu0
        %818 = vmatprep.mubr.f32.mxu0 0.0
        %819 = vmatmul.mubr.f32.gmra.mrb[0].mxu0 %v701
        %v820 = vpop.f32.mrb[0].mxu0
        %v821 = vadd.f32 0.0, %v820
        %v822 = vpop.f32.mrb[0].mxu0
        %823 = vmatprep.mubr.f32.mxu0 0.0
        %824 = vmatmul.mubr.f32.gmra.mrb[0].mxu0 %v704
        %v825 = vpop.f32.mrb[0].mxu0
        %v826 = vadd.f32 0.0, %v825
        %v827 = vpop.f32.mrb[0].mxu0
        %828 = vmatprep.mubr.f32.mxu0 0.0
        %829 = vmatmul.mubr.f32.gmra.mrb[0].mxu0 %v707
        %v830 = vpop.f32.mrb[0].mxu0
        %v831 = vadd.f32 0.0, %v830
        %v832 = vpop.f32.mrb[0].mxu0
        %833 = vmatprep.mubr.f32.mxu0 0.0
        %834 = vmatmul.mubr.f32.gmra.mrb[0].mxu0 %v710
        %v835 = vpop.f32.mrb[0].mxu0
        %v836 = vadd.f32 0.0, %v835
        %v837 = vpop.f32.mrb[0].mxu0
        %838 = vmatprep.mubr.f32.mxu0 0.0
        %839 = vmatmul.mubr.f32.gmra.mrb[0].mxu0 %v713
        %v840 = vpop.f32.mrb[0].mxu0
        %v841 = vadd.f32 0.0, %v840
        %v842 = vpop.f32.mrb[0].mxu0
        %843 = vmatprep.mubr.f32.mxu0 0.0
        %844 = vmatmul.mubr.f32.gmra.mrb[0].mxu0 %v716
        %v845 = vpop.f32.mrb[0].mxu0
        %v846 = vadd.f32 0.0, %v845
        %v847 = vpop.f32.mrb[0].mxu0
        %848 = vmatprep.mubr.f32.mxu0 0.0
        %849 = vmatmul.mubr.f32.gmra.mrb[0].mxu0 %v719
        %v850 = vpop.f32.mrb[0].mxu0
        %v851 = vadd.f32 0.0, %v850
        %v852 = vpop.f32.mrb[0].mxu0
        %853 = vmatprep.mubr.f32.mxu0 0.0
        %854 = vmatmul.mubr.f32.gmra.mrb[0].mxu0 %v722
        %v855 = vpop.f32.mrb[0].mxu0
        %v856 = vadd.f32 0.0, %v855
        %v857 = vpop.f32.mrb[0].mxu0
        %858 = vmatprep.mubr.f32.mxu0 0.0
        %859 = vmatmul.mubr.f32.gmra.mrb[0].mxu0 %v725
        %v860 = vpop.f32.mrb[0].mxu0
        %v861 = vadd.f32 0.0, %v860
        %v862 = vpop.f32.mrb[0].mxu0
        %863 = vmatprep.mubr.f32.mxu0 0.0
        %864 = vmatmul.mubr.f32.gmra.mrb[0].mxu0 %v728
        %v865 = vpop.f32.mrb[0].mxu0
        %v866 = vadd.f32 0.0, %v865
        %v867 = vpop.f32.mrb[0].mxu0
        %868 = vmatprep.mubr.f32.mxu0 0.0
        %869 = vmatmul.mubr.f32.gmra.mrb[0].mxu0 %v731
        %v870 = vpop.f32.mrb[0].mxu0
        %v871 = vadd.f32 0.0, %v870
        %v872 = vpop.f32.mrb[0].mxu0
        %873 = vmatprep.mubr.f32.mxu0 0.0
        %874 = vmatmul.mubr.f32.gmra.mrb[0].mxu0 %v734
        %v875 = vpop.f32.mrb[0].mxu0
        %v876 = vadd.f32 0.0, %v875
        %v877 = vpop.f32.mrb[0].mxu0
        %878 = vmatprep.mubr.f32.mxu0 0.0
        %879 = vmatmul.mubr.f32.gmra.mrb[0].mxu0 %v737
        %v880 = vpop.f32.mrb[0].mxu0
        %v881 = vadd.f32 0.0, %v880
        %v882 = vpop.f32.mrb[0].mxu0
        %883 = vdwg.mxu0
        %884 = vst [vmem:[%s334] sm:$0xff] %v806
        %885 = vst [vmem:[%s334 + $0x8] sm:$0xff] %v811
        %886 = vst [vmem:[%s334 + $0x10] sm:$0xff] %v816
        %887 = vst [vmem:[%s334 + $0x18] sm:$0xff] %v821
        %888 = vst [vmem:[%s334 + $0x20] sm:$0xff] %v826
        %889 = vst [vmem:[%s334 + $0x28] sm:$0xff] %v831
        %890 = vst [vmem:[%s334 + $0x30] sm:$0xff] %v836
        %891 = vst [vmem:[%s334 + $0x38] sm:$0xff] %v841
        %892 = vst [vmem:[%s334 + $0x40] sm:$0xff] %v846
        %893 = vst [vmem:[%s334 + $0x48] sm:$0xff] %v851
        %894 = vst [vmem:[%s334 + $0x50] sm:$0xff] %v856
        %895 = vst [vmem:[%s334 + $0x58] sm:$0xff] %v861
        %896 = vst [vmem:[%s334 + $0x60] sm:$0xff] %v866
        %897 = vst [vmem:[%s334 + $0x68] sm:$0xff] %v871
        %898 = vst [vmem:[%s334 + $0x70] sm:$0xff] %v876
        %899 = vst [vmem:[%s334 + $0x78] sm:$0xff] %v881
        %s900 = sand.u32 %s132, 1
        %s901 = scalar_lea.sflag [#allocation4], %s900
        %s902 = sand.u32 %s132, 1
        %s903 = smul.addr %s902, 16
        %s904 = scalar_lea.vmem [#allocation8], %s903
        %s905 = sand.u32 %s30, 1
        %s906 = scalar_lea.sflag [#allocation10], %s905
        %s907 = sand.u32 %s158, 1
        %s908 = smul.addr %s907, 128
        %s909 = scalar_lea.vmem [#allocation9], %s908
        %s910 = sand.u32 %s30, 1
        %s911 = scalar_lea.sflag [#allocation10], %s910
        %s912 = sand.u32 %s184, 1
        %s913 = smul.addr %s912, 16
        %s914 = scalar_lea.vmem [#allocation11], %s913
        // Predicated region
        $region49: #{tpu_custom_call.1} parent=35 // pred_check
          %p915 = pneg %p142
        $region50: #{tpu_custom_call.1} parent=35 // pred_check_branch
          %917 = sbr.rel (%p915) target = $region52
        $region51: #{tpu_custom_call.1} parent=35 // pred_region
          %s919 = ssub.s32 256, 256
          %920 = vsyncadd %s901, %s919
          %s921 = smul.addr %s30, 2
          %s922 = smul.addr %s921, 128
          %s923 = scalar_lea.hbm %s4, %s922
          %s924 = sshll.u32 %s904, 4
          %s925 = int_to_ptr.vmem [resolvable:$true] %s924
          %930 = dma.vmem_to_hbm [thread:$0]  %s925, 256, %s923, %s901, 128, 128, 8
        $region52: #{tpu_custom_call.1} parent=35 // pred_fallthru
          _
        // Predicated region
        $region53: #{tpu_custom_call.1} parent=35 // pred_check
          %p931 = pneg %p168
        $region54: #{tpu_custom_call.1} parent=35 // pred_check_branch
          %933 = sbr.rel (%p931) target = $region56
        $region55: #{tpu_custom_call.1} parent=35 // pred_region
          %s935 = ssub.s32 2048, 2048
          %936 = vsyncadd %s906, %s935
          %s937 = smul.addr %s30, 16
          %s938 = smul.addr %s937, 128
          %s939 = scalar_lea.hbm %s5, %s938
          %s940 = sshll.u32 %s909, 4
          %s941 = int_to_ptr.vmem [resolvable:$true] %s940
          %946 = dma.vmem_to_hbm [thread:$0]  %s941, 2048, %s939, %s906, 128, 128, 8
        $region56: #{tpu_custom_call.1} parent=35 // pred_fallthru
          _
        // Predicated region
        $region57: #{tpu_custom_call.1} parent=35 // pred_check
          %p947 = pneg %p194
        $region58: #{tpu_custom_call.1} parent=35 // pred_check_branch
          %949 = sbr.rel (%p947) target = $region60
        $region59: #{tpu_custom_call.1} parent=35 // pred_region
          %s951 = ssub.s32 256, 256
          %952 = vsyncadd %s911, %s951
          %s953 = smul.addr %s30, 2
          %s954 = smul.addr %s953, 128
          %s955 = scalar_lea.hbm %s6, %s954
          %s956 = sshll.u32 %s914, 4
          %s957 = int_to_ptr.vmem [resolvable:$true] %s956
          %962 = dma.vmem_to_hbm [thread:$0]  %s957, 256, %s955, %s911, 128, 128, 8
        $region60: #{tpu_custom_call.1} parent=35 // pred_fallthru
          _
      $region36: #{tpu_custom_call.1} parent=5 // pred_fallthru
        _
      %p963 = scmp.le.s32.totalorder 2, %s25
      // Predicated region
      $region61: #{tpu_custom_call.1} parent=5 // pred_check
        %p964 = pneg %p963
      $region62: #{tpu_custom_call.1} parent=5 // pred_check_branch
        %966 = sbr.rel (%p964) target = $region64
      $region63: #{tpu_custom_call.1} parent=5 // pred_region
        %s967 = ssub.s32 %s25, 2
        // Predicated region
        $region65: #{tpu_custom_call.1} parent=63 // pred_check
          %p968 = pneg %p148
        $region66: #{tpu_custom_call.1} parent=63 // pred_check_branch
          %970 = sbr.rel (%p968) target = $region68
        $region67: #{tpu_custom_call.1} parent=63 // pred_region
          %s971 = sand.u32 %s133, 1
          %s972 = scalar_lea.sflag [#allocation4], %s971
          %s973 = sand.u32 %s133, 1
          %s974 = smul.addr %s973, 16
          %s975 = scalar_lea.vmem [#allocation8], %s974
          %976 = dma.done %s972, 256
        $region68: #{tpu_custom_call.1} parent=63 // pred_fallthru
          _
        // Predicated region
        $region69: #{tpu_custom_call.1} parent=63 // pred_check
          %p977 = pneg %p174
        $region70: #{tpu_custom_call.1} parent=63 // pred_check_branch
          %979 = sbr.rel (%p977) target = $region72
        $region71: #{tpu_custom_call.1} parent=63 // pred_region
          %s980 = sand.u32 %s31, 1
          %s981 = scalar_lea.sflag [#allocation10], %s980
          %s982 = sand.u32 %s159, 1
          %s983 = smul.addr %s982, 128
          %s984 = scalar_lea.vmem [#allocation9], %s983
          %985 = dma.done %s981, 2048
        $region72: #{tpu_custom_call.1} parent=63 // pred_fallthru
          _
        // Predicated region
        $region73: #{tpu_custom_call.1} parent=63 // pred_check
          %p986 = pneg %p200
        $region74: #{tpu_custom_call.1} parent=63 // pred_check_branch
          %988 = sbr.rel (%p986) target = $region76
        $region75: #{tpu_custom_call.1} parent=63 // pred_region
          %s989 = sand.u32 %s31, 1
          %s990 = scalar_lea.sflag [#allocation10], %s989
          %s991 = sand.u32 %s185, 1
          %s992 = smul.addr %s991, 16
          %s993 = scalar_lea.vmem [#allocation11], %s992
          %994 = dma.done %s990, 256
        $region76: #{tpu_custom_call.1} parent=63 // pred_fallthru
          _
      $region64: #{tpu_custom_call.1} parent=5 // pred_fallthru
        _
    $region6: #{tpu_custom_call.1} parent=1 // loop_footer
      %s29 = sadd.s32 1, %s25
    $region7: #{tpu_custom_call.1} parent=1 // loop_footer_branch
      %24 = sbr.rel target = $region3
    $region8: #{tpu_custom_call.1} parent=1 // loop_exit
      _
    %995 = vsyncpa [#allocation3], 1
    %s996 = scalar_lea.sflag [#allocation3], 1
    %997 = vsyncpa %s996, 1
    %998 = vsyncpa [#allocation6], 1
    %s999 = scalar_lea.sflag [#allocation6], 1
    %1000 = vsyncpa %s999, 1
    %1001 = vsyncpa [#allocation4], 1
    %s1002 = scalar_lea.sflag [#allocation4], 1
    %1003 = vsyncpa %s1002, 1
    %1004 = vsyncpa [#allocation10], 1
    %s1005 = scalar_lea.sflag [#allocation10], 1
    %1006 = vsyncpa %s1005, 1

</llo_original>
